<compile_context>
chip_gen: v7x
topology: tpu7x:2x2x1
jax: 0.10.0
libtpu: 0.0.40
codegen_flags: <defaults>
</compile_context>

<pallas_src>
import numpy as np
import jax
import jax.numpy as jnp
from jax import lax
from jax.experimental import pallas as pl
from jax.experimental.pallas import tpu as pltpu


# ----------------------------------------------------------------- small utils
def _round_up(x, m):
    return ((x + m - 1) // m) * m


def _largest_divisor_leq(n, cap):
    cap = int(max(1, min(n, cap)))
    for d in range(cap, 0, -1):
        if n % d == 0:
            return d
    return 1


# ------------------------------------------------------------- fused kernel
def make_fused_kernel(tc, ncb, nca, seq_len):
    """One grid step = one (class_tile, batch_element) pair.

    meta_inputs[b*n_cls + c] = [im[b], text[c]], so
      Linear1(meta_inputs)[b, c] = im[b] @ W1_img^T + text[c] @ W1_txt^T + b1
    The MLP weights are tiny and VMEM-resident; biases are produced per tile in
    a VMEM scratch and consumed immediately by the prompt assembly (no HBM
    round-trip).
    """

    def kernel(offs_ref,          # SMEM (n_cls,) int32: clamped 1+ncb+name_len
               im_ref,            # VMEM (B, vis)         resident (const block)
               txt_ref,           # VMEM (n_cls, vis)     resident
               w1i_ref,           # VMEM (vis, Hp)        resident
               w1t_ref,           # VMEM (vis, Hp)        resident
               b1_ref,            # VMEM (1, Hp)          resident
               w2_ref,            # VMEM (Hp, ctx)        resident
               b2_ref,            # VMEM (1, ctx)         resident
               base_ref,          # VMEM (tc, seq, ctx)   per class tile
               ctxb_ref,          # VMEM (ncb, ctx)       resident
               ctxa_ref,          # VMEM (nca, ctx)       resident
               out_ref,           # VMEM (1, tc, seq, ctx)
               bias_sc):          # VMEM scratch (tc, ctx) f32
        ct = pl.program_id(0)     # class-tile index (outer -> base tile reused over b)
        b = pl.program_id(1)      # batch index (inner)

        # ---- fused meta_net: biases for this (class tile, batch element) ----
        im_row = im_ref[pl.ds(b, 1), :].astype(jnp.float32)                 # (1, vis)
        txt_rows = txt_ref[pl.ds(ct * tc, tc), :].astype(jnp.float32)       # (tc, vis)
        im_part = jnp.dot(im_row, w1i_ref[...],
                          preferred_element_type=jnp.float32)               # (1, Hp)
        txt_part = jnp.dot(txt_rows, w1t_ref[...],
                           preferred_element_type=jnp.float32)              # (tc, Hp)
        h = jnp.maximum(im_part + txt_part + b1_ref[...], 0.0)              # (tc, Hp)
        bias_sc[...] = (jnp.dot(h, w2_ref[...],
                                preferred_element_type=jnp.float32)
                        + b2_ref[...])                                       # (tc, ctx) f32

        # ---- prompt assembly: frozen embedding copy, then patch ctx slots ----
        out_ref[0] = base_ref[...].astype(out_ref.dtype)
        bias = bias_sc[...]                                                  # (tc, ctx) f32

        # ctx_beforename slots: positions [1, 1+ncb) for every class in the tile.
        if ncb > 0:
            blk = ctxb_ref[...].astype(jnp.float32)[None, :, :] + bias[:, None, :]
            out_ref[0, :, 1:1 + ncb, :] = blk.astype(out_ref.dtype)

        # ctx_aftername slots: per-class dynamic offset (batch-independent,
        # precomputed & clamped host-side, read from SMEM).
        if nca > 0:
            ctxa = ctxa_ref[...].astype(jnp.float32)

            def body(c, carry):
                off = offs_ref[ct * tc + c]
                rows = ctxa + bias_sc[pl.ds(c, 1), :]                        # (nca, ctx) f32
                out_ref[0, c, pl.ds(off, nca), :] = rows.astype(out_ref.dtype)
                return carry

            lax.fori_loop(0, tc, body, 0, unroll=min(tc, 8))

    return kernel


# --------------------------------------------------------------------- wrapper
def prompt_learner_forward(im_features, params, out_dtype=jnp.bfloat16,
                           class_tile=None):
    """Equivalent of PromptLearnerMultimodal.forward(im_features) (custom_text_inputs=None)."""
    # TODO(synk): custom_text_inputs path and n_ctx == 0 (ctx_* is None) cases not wired up.
    im_features = jnp.asarray(im_features, jnp.float32)
    text_inputs = jnp.asarray(params["text_inputs"], jnp.float32)
    w1, b1 = params["w1"], params["b1"]
    w2, b2 = params["w2"], params["b2"]
    base_emb = params["base_emb"]
    ctxb = params["ctx_beforename"]
    ctxa = params["ctx_aftername"]
    name_lens = params["name_lens"]

    B, vis = im_features.shape
    n_cls, seq_len, ctx_dim = base_emb.shape
    hidden = w1.shape[0]
    ncb, nca = ctxb.shape[0], ctxa.shape[0]
    assert ncb > 0 and nca > 0, "n_ctx==0 path not implemented"
    assert text_inputs.shape == (n_cls, vis)

    # Split Linear1 along its input dim (image half / text half), pre-transpose
    # for row-major matmuls, and zero-pad the hidden dim to a multiple of 128 so
    # the hidden activations are lane-dense.  Padding contributes exactly zero
    # (padded b1 entries are 0 -> ReLU(0)=0 -> padded w2 rows are 0 anyway).
    hp = _round_up(hidden, 128)
    pad_h = hp - hidden
    w1_img_t = jnp.pad(w1[:, :vis].T.astype(jnp.float32), ((0, 0), (0, pad_h)))
    w1_txt_t = jnp.pad(w1[:, vis:].T.astype(jnp.float32), ((0, 0), (0, pad_h)))
    b1_p = jnp.pad(b1.astype(jnp.float32), (0, pad_h)).reshape(1, hp)
    w2_t = jnp.pad(w2.T.astype(jnp.float32), ((0, pad_h), (0, 0)))
    b2_2d = b2.astype(jnp.float32).reshape(1, ctx_dim)

    # Frozen embeddings / learned ctx stored at output precision (bf16 default):
    # the assembly is HBM-write bound; the bias math stays f32 inside the kernel.
    store_dt = (jnp.bfloat16 if jnp.dtype(out_dtype) == jnp.dtype(jnp.bfloat16)
                else jnp.float32)
    base_emb = base_emb.astype(store_dt)
    ctxb = ctxb.astype(store_dt)
    ctxa = ctxa.astype(store_dt)

    # Batch-independent, clamped ctx_after offsets (SMEM via scalar prefetch).
    offs = jnp.minimum(1 + ncb + name_lens.astype(jnp.int32),
                       seq_len - nca).astype(jnp.int32)

    # ---- class-tile size: double-buffered (base + out) tiles under ~12 MiB ----
    base_item = jnp.dtype(store_dt).itemsize
    out_item = jnp.dtype(out_dtype).itemsize
    per_cls_pipe = 2 * seq_len * ctx_dim * (base_item + out_item)
    budget = 12 * 1024 * 1024
    if class_tile is None:
        tc = _largest_divisor_leq(n_cls, max(1, budget // per_cls_pipe))
    else:
        tc = int(class_tile)
        assert n_cls % tc == 0, "class_tile must divide n_cls"
    n_ct = n_cls // tc

    # ---- VMEM footprint estimate -> explicit vmem_limit_bytes with headroom ----
    def nbytes(shape, dt):
        return int(np.prod(shape)) * jnp.dtype(dt).itemsize

    resident = (nbytes((B, vis), jnp.float32) + nbytes((n_cls, vis), jnp.float32)
                + 2 * nbytes((vis, hp), jnp.float32) + nbytes((1, hp), jnp.float32)
                + nbytes((hp, ctx_dim), jnp.float32) + nbytes((1, ctx_dim), jnp.float32)
                + nbytes((ncb, ctx_dim), store_dt) + nbytes((nca, ctx_dim), store_dt))
    pipelined = 2 * (nbytes((tc, seq_len, ctx_dim), store_dt)
                     + nbytes((tc, seq_len, ctx_dim), out_dtype))
    scratch = nbytes((tc, ctx_dim), jnp.float32)
    est = 2 * resident + pipelined + scratch
    vmem_limit = int(min(64 * 1024 * 1024, max(32 * 1024 * 1024, 2 * est)))

    # ---- advisory cost estimate (helps XLA schedule around the HBM-bound call) ----
    flops = int(2 * B * (n_ct * vis * hp + n_cls * vis * hp + n_cls * hp * ctx_dim)
                + B * n_cls * (ncb + nca) * ctx_dim)
    bytes_accessed = int(B * n_cls * seq_len * ctx_dim * out_item
                         + n_cls * seq_len * ctx_dim * base_item
                         + resident)
    cost = pl.CostEstimate(flops=flops, transcendentals=0,
                           bytes_accessed=bytes_accessed)

    kernel = make_fused_kernel(tc, ncb, nca, seq_len)

    grid_spec = pltpu.PrefetchScalarGridSpec(
        num_scalar_prefetch=1,                 # offs -> SMEM
        grid=(n_ct, B),                        # class tile OUTER, batch INNER
        in_specs=[
            pl.BlockSpec((B, vis), lambda ct, b, offs: (0, 0)),           # im (resident)
            pl.BlockSpec((n_cls, vis), lambda ct, b, offs: (0, 0)),       # text (resident)
            pl.BlockSpec((vis, hp), lambda ct, b, offs: (0, 0)),          # W1 image half
            pl.BlockSpec((vis, hp), lambda ct, b, offs: (0, 0)),          # W1 text half
            pl.BlockSpec((1, hp), lambda ct, b, offs: (0, 0)),            # b1
            pl.BlockSpec((hp, ctx_dim), lambda ct, b, offs: (0, 0)),      # W2
            pl.BlockSpec((1, ctx_dim), lambda ct, b, offs: (0, 0)),       # b2
            pl.BlockSpec((tc, seq_len, ctx_dim),
                         lambda ct, b, offs: (ct, 0, 0)),                 # base_emb tile
            pl.BlockSpec((ncb, ctx_dim), lambda ct, b, offs: (0, 0)),     # ctx_before
            pl.BlockSpec((nca, ctx_dim), lambda ct, b, offs: (0, 0)),     # ctx_after
        ],
        out_specs=pl.BlockSpec((1, tc, seq_len, ctx_dim),
                               lambda ct, b, offs: (b, ct, 0, 0)),
        scratch_shapes=[pltpu.VMEM((tc, ctx_dim), jnp.float32)],
    )

    return pl.pallas_call(
        kernel,
        out_shape=jax.ShapeDtypeStruct((B, n_cls, seq_len, ctx_dim), out_dtype),
        grid_spec=grid_spec,
        cost_estimate=cost,
        compiler_params=pltpu.CompilerParams(
            dimension_semantics=("parallel", "parallel"),
            vmem_limit_bytes=vmem_limit),
    )(offs, im_features, text_inputs, w1_img_t, w1_txt_t, b1_p, w2_t, b2_2d,
      base_emb, ctxb, ctxa)


# ------------------------------------------------------------------- reference
def reference_forward(im_features, text_inputs, w1, b1, w2, b2,
                      base_emb, ctx_before, ctx_after, name_lens_py):
    B = im_features.shape[0]
    n_cls = text_inputs.shape[0]
    ncb = ctx_before.shape[0]
    nca = ctx_after.shape[0]

    my_text = jnp.tile(text_inputs, (B, 1))
    im_rep = jnp.repeat(im_features, n_cls, axis=0)
    meta_in = jnp.concatenate([im_rep, my_text], axis=1)
    h = jnp.maximum(meta_in @ w1.T + b1, 0.0)
    biases = h @ w2.T + b2                                    # (B*n_cls, ctx_dim)

    prompts = []
    for b in range(B):
        rows = []
        for c in range(n_cls):
            bias = biases[b * n_cls + c]
            nl = name_lens_py[c]
            start = base_emb[c, :1]
            name = base_emb[c, 1 + ncb:1 + ncb + nl]
            end = base_emb[c, 1 + ncb + nl + nca:]
            p = jnp.concatenate(
                [start, ctx_before + bias, name, ctx_after + bias, end], axis=0)
            rows.append(p)
        prompts.append(jnp.stack(rows))
    return jnp.stack(prompts)


# ------------------------------------------------------------------------ main
if __name__ == "__main__":
    B = 2            # batch of image features
    n_cls = 4        # number of classes
    vis_dim = 64     # clip_model.visual.output_dim
    ctx_dim = 128    # clip_model.ln_final width -- multiple of 128 (lane-dense)
    hidden = vis_dim // 16
    seq_len = 16     # tokenized prompt length (stand-in for 77)
    n_ctx_before, n_ctx_after = 2, 2
    name_lens_py = [1, 2, 3, 1]          # per-class tokenized name lengths

    key = jax.random.PRNGKey(0)
    ks = jax.random.split(key, 8)

    # deterministic synthetic parameters (shapes from the module's __init__)
    ctx_beforename = 0.02 * jax.random.normal(ks[0], (n_ctx_before, ctx_dim), jnp.float32)
    ctx_aftername = 0.02 * jax.random.normal(ks[1], (n_ctx_after, ctx_dim), jnp.float32)
    w1 = 0.02 * jax.random.normal(ks[2], (hidden, 2 * vis_dim), jnp.float32)   # linear1
    b1 = 0.01 * jax.random.normal(ks[3], (hidden,), jnp.float32)
    w2 = 0.02 * jax.random.normal(ks[4], (ctx_dim, hidden), jnp.float32)       # linear2
    b2 = 0.01 * jax.random.normal(ks[5], (ctx_dim,), jnp.float32)
    ti = jax.random.normal(ks[6], (n_cls, vis_dim), jnp.float32)
    text_inputs = ti / jnp.linalg.norm(ti, axis=-1, keepdims=True)             # normalized
    # synthetic frozen token embedding of the tokenized prompts (n_cls, seq, ctx_dim)
    base_emb = 0.02 * jax.random.normal(ks[7], (n_cls, seq_len, ctx_dim), jnp.float32)

    im_features = jax.random.normal(jax.random.PRNGKey(1), (B, vis_dim), jnp.float32)

    params = dict(
        ctx_beforename=ctx_beforename,
        ctx_aftername=ctx_aftername,
        w1=w1, b1=b1, w2=w2, b2=b2,
        text_inputs=text_inputs,
        base_emb=base_emb,
        name_lens=jnp.array(name_lens_py, dtype=jnp.int32),
    )

    ref = reference_forward(im_features, text_inputs, w1, b1, w2, b2,
                            base_emb, ctx_beforename, ctx_aftername, name_lens_py)

    # f32 path with class tiling explicitly exercised (2 class tiles x B steps).
    prompts = prompt_learner_forward(im_features, params, out_dtype=jnp.float32,
                                     class_tile=2)
    prompts = jax.block_until_ready(prompts)
    assert prompts.shape == (B, n_cls, seq_len, ctx_dim), prompts.shape
    np.testing.assert_allclose(np.asarray(prompts), np.asarray(ref),
                               rtol=1e-5, atol=1e-5)

    # default bf16-storage path (original module runs fp16) — halves the HBM
    # write traffic of the memory-bound assembly; arithmetic stays f32 in-kernel.
    prompts_bf16 = prompt_learner_forward(im_features, params)   # auto class tile
    prompts_bf16 = jax.block_until_ready(prompts_bf16)
    np.testing.assert_allclose(np.asarray(prompts_bf16).astype(np.float32),
                               np.asarray(ref), rtol=5e-2, atol=2e-2)

    print("KERNEL_OK")
</pallas_src>

<mosaic_0001>
module attributes {stable_mosaic.version = 11 : i64} {
  func.func @kernel(%arg0: i32, %arg1: i32, %arg2: memref<4xi32, #tpu.memory_space<smem>>, %arg3: memref<2x64xf32, #tpu.memory_space<vmem>>, %arg4: memref<4x64xf32, #tpu.memory_space<vmem>>, %arg5: memref<64x128xf32, #tpu.memory_space<vmem>>, %arg6: memref<64x128xf32, #tpu.memory_space<vmem>>, %arg7: memref<1x128xf32, #tpu.memory_space<vmem>>, %arg8: memref<128x128xf32, #tpu.memory_space<vmem>>, %arg9: memref<1x128xf32, #tpu.memory_space<vmem>>, %arg10: memref<2x16x128xf32, #tpu.memory_space<vmem>>, %arg11: memref<2x128xf32, #tpu.memory_space<vmem>>, %arg12: memref<2x128xf32, #tpu.memory_space<vmem>>, %arg13: memref<1x2x16x128xf32, #tpu.memory_space<vmem>>, %arg14: memref<2x128xf32, #tpu.memory_space<vmem>>) attributes {dimension_semantics = [#tpu.dimension_semantics<parallel>, #tpu.dimension_semantics<parallel>], iteration_bounds = array<i64: 2, 2>, scalar_prefetch = 1 : i64, scratch_operands = 1 : i64, tpu.core_type = #tpu.core_type<tc>, window_params = [{pipeline_mode = #tpu.pipeline_mode<synchronous>, transform_indices = @transform_0, window_bounds = array<i64: 2, 64>}, {pipeline_mode = #tpu.pipeline_mode<synchronous>, transform_indices = @transform_1, window_bounds = array<i64: 4, 64>}, {pipeline_mode = #tpu.pipeline_mode<synchronous>, transform_indices = @transform_2, window_bounds = array<i64: 64, 128>}, {pipeline_mode = #tpu.pipeline_mode<synchronous>, transform_indices = @transform_3, window_bounds = array<i64: 64, 128>}, {pipeline_mode = #tpu.pipeline_mode<synchronous>, transform_indices = @transform_4, window_bounds = array<i64: 1, 128>}, {pipeline_mode = #tpu.pipeline_mode<synchronous>, transform_indices = @transform_5, window_bounds = array<i64: 128, 128>}, {pipeline_mode = #tpu.pipeline_mode<synchronous>, transform_indices = @transform_6, window_bounds = array<i64: 1, 128>}, {transform_indices = @transform_7, window_bounds = array<i64: 2, 16, 128>}, {pipeline_mode = #tpu.pipeline_mode<synchronous>, transform_indices = @transform_8, window_bounds = array<i64: 2, 128>}, {pipeline_mode = #tpu.pipeline_mode<synchronous>, transform_indices = @transform_9, window_bounds = array<i64: 2, 128>}, {transform_indices = @transform_10, window_bounds = array<i64: 1, 2, 16, 128>}]} {
    %0 = arith.index_cast %arg1 : i32 to index
    %c0 = arith.constant 0 : index
    %1 = vector.load %arg3[%0, %c0] : memref<2x64xf32, #tpu.memory_space<vmem>>, vector<1x64xf32>
    %c2_i32 = arith.constant 2 : i32
    %2 = arith.muli %arg0, %c2_i32 : i32
    %3 = arith.index_cast %2 : i32 to index
    %c0_0 = arith.constant 0 : index
    %4 = vector.load %arg4[%3, %c0_0] : memref<4x64xf32, #tpu.memory_space<vmem>>, vector<2x64xf32>
    %c0_1 = arith.constant 0 : index
    %c0_2 = arith.constant 0 : index
    %5 = vector.load %arg5[%c0_1, %c0_2] : memref<64x128xf32, #tpu.memory_space<vmem>>, vector<64x128xf32>
    %cst = arith.constant dense<0.000000e+00> : vector<1x128xf32>
    %6 = tpu.matmul %1, %5, %cst {dimension_numbers = #tpu.dot_dimension_numbers<[1], [0], [0], [1], [0, 0, 1, 1], [], []>} : vector<1x64xf32>, vector<64x128xf32>, vector<1x128xf32> -> vector<1x128xf32>
    %c0_3 = arith.constant 0 : index
    %c0_4 = arith.constant 0 : index
    %7 = vector.load %arg6[%c0_3, %c0_4] : memref<64x128xf32, #tpu.memory_space<vmem>>, vector<64x128xf32>
    %cst_5 = arith.constant dense<0.000000e+00> : vector<2x128xf32>
    %8 = tpu.matmul %4, %7, %cst_5 {dimension_numbers = #tpu.dot_dimension_numbers<[1], [0], [0], [1], [0, 0, 1, 1], [], []>} : vector<2x64xf32>, vector<64x128xf32>, vector<2x128xf32> -> vector<2x128xf32>
    %9 = vector.broadcast %6 : vector<1x128xf32> to vector<2x128xf32>
    %10 = arith.addf %9, %8 : vector<2x128xf32>
    %c0_6 = arith.constant 0 : index
    %c0_7 = arith.constant 0 : index
    %11 = vector.load %arg7[%c0_6, %c0_7] : memref<1x128xf32, #tpu.memory_space<vmem>>, vector<1x128xf32>
    %12 = vector.broadcast %11 : vector<1x128xf32> to vector<2x128xf32>
    %13 = arith.addf %10, %12 : vector<2x128xf32>
    %cst_8 = arith.constant 0.000000e+00 : f32
    %14 = vector.broadcast %cst_8 : f32 to vector<2x128xf32>
    %15 = arith.maximumf %13, %14 : vector<2x128xf32>
    %c0_9 = arith.constant 0 : index
    %c0_10 = arith.constant 0 : index
    %16 = vector.load %arg8[%c0_9, %c0_10] : memref<128x128xf32, #tpu.memory_space<vmem>>, vector<128x128xf32>
    %cst_11 = arith.constant dense<0.000000e+00> : vector<2x128xf32>
    %17 = tpu.matmul %15, %16, %cst_11 {dimension_numbers = #tpu.dot_dimension_numbers<[1], [0], [0], [1], [0, 0, 1, 1], [], []>} : vector<2x128xf32>, vector<128x128xf32>, vector<2x128xf32> -> vector<2x128xf32>
    %c0_12 = arith.constant 0 : index
    %c0_13 = arith.constant 0 : index
    %18 = vector.load %arg9[%c0_12, %c0_13] : memref<1x128xf32, #tpu.memory_space<vmem>>, vector<1x128xf32>
    %19 = vector.broadcast %18 : vector<1x128xf32> to vector<2x128xf32>
    %20 = arith.addf %17, %19 : vector<2x128xf32>
    %c0_14 = arith.constant 0 : index
    %c0_15 = arith.constant 0 : index
    %21 = vector.load %arg14[%c0_14, %c0_15] : memref<2x128xf32, #tpu.memory_space<vmem>>, vector<2x128xf32>
    tpu.vector_store %arg14[%c0_14, %c0_15], %20 {strides = array<i32>} : memref<2x128xf32, #tpu.memory_space<vmem>>, vector<2x128xf32>,
    %c0_16 = arith.constant 0 : index
    %c0_17 = arith.constant 0 : index
    %c0_18 = arith.constant 0 : index
    %22 = vector.load %arg10[%c0_16, %c0_17, %c0_18] : memref<2x16x128xf32, #tpu.memory_space<vmem>>, vector<2x16x128xf32>
    %c0_19 = arith.constant 0 : index
    %c0_20 = arith.constant 0 : index
    %c0_21 = arith.constant 0 : index
    %c0_22 = arith.constant 0 : index
    %23 = vector.load %arg13[%c0_19, %c0_20, %c0_21, %c0_22] : memref<1x2x16x128xf32, #tpu.memory_space<vmem>>, vector<1x2x16x128xf32>
    %24 = vector.shape_cast %23 : vector<1x2x16x128xf32> to vector<2x16x128xf32>
    %25 = vector.shape_cast %22 : vector<2x16x128xf32> to vector<1x2x16x128xf32>
    tpu.vector_store %arg13[%c0_19, %c0_20, %c0_21, %c0_22], %25 {strides = array<i32>} : memref<1x2x16x128xf32, #tpu.memory_space<vmem>>, vector<1x2x16x128xf32>,
    %c0_23 = arith.constant 0 : index
    %c0_24 = arith.constant 0 : index
    %26 = vector.load %arg14[%c0_23, %c0_24] : memref<2x128xf32, #tpu.memory_space<vmem>>, vector<2x128xf32>
    %c0_25 = arith.constant 0 : index
    %c0_26 = arith.constant 0 : index
    %27 = vector.load %arg11[%c0_25, %c0_26] : memref<2x128xf32, #tpu.memory_space<vmem>>, vector<2x128xf32>
    %28 = vector.shape_cast %27 : vector<2x128xf32> to vector<1x2x128xf32>
    %29 = vector.shape_cast %26 : vector<2x128xf32> to vector<2x1x128xf32>
    %30 = vector.broadcast %28 : vector<1x2x128xf32> to vector<2x2x128xf32>
    %31 = vector.broadcast %29 : vector<2x1x128xf32> to vector<2x2x128xf32>
    %32 = arith.addf %30, %31 : vector<2x2x128xf32>
    %c0_27 = arith.constant 0 : index
    %c0_28 = arith.constant 0 : index
    %c1 = arith.constant 1 : index
    %c0_29 = arith.constant 0 : index
    %33 = vector.load %arg13[%c0_27, %c0_28, %c1, %c0_29] : memref<1x2x16x128xf32, #tpu.memory_space<vmem>>, vector<1x2x2x128xf32>
    %34 = vector.shape_cast %33 : vector<1x2x2x128xf32> to vector<2x2x128xf32>
    %35 = vector.shape_cast %32 : vector<2x2x128xf32> to vector<1x2x2x128xf32>
    tpu.vector_store %arg13[%c0_27, %c0_28, %c1, %c0_29], %35 {strides = array<i32>} : memref<1x2x16x128xf32, #tpu.memory_space<vmem>>, vector<1x2x2x128xf32>,
    %c0_30 = arith.constant 0 : index
    %c0_31 = arith.constant 0 : index
    %36 = vector.load %arg12[%c0_30, %c0_31] : memref<2x128xf32, #tpu.memory_space<vmem>>, vector<2x128xf32>
    %c0_i32 = arith.constant 0 : i32
    %c2_i32_32 = arith.constant 2 : i32
    %37 = arith.muli %arg0, %c2_i32_32 : i32
    %38 = arith.addi %37, %c0_i32 : i32
    %39 = arith.index_cast %38 : i32 to index
    %40 = memref.load %arg2[%39] : memref<4xi32, #tpu.memory_space<smem>>
    %41 = arith.index_cast %c0_i32 : i32 to index
    %c0_33 = arith.constant 0 : index
    %42 = vector.load %arg14[%41, %c0_33] : memref<2x128xf32, #tpu.memory_space<vmem>>, vector<1x128xf32>
    %43 = vector.broadcast %42 : vector<1x128xf32> to vector<2x128xf32>
    %44 = arith.addf %36, %43 : vector<2x128xf32>
    %c0_34 = arith.constant 0 : index
    %45 = arith.index_cast %c0_i32 : i32 to index
    %46 = arith.index_cast %40 : i32 to index
    %c0_35 = arith.constant 0 : index
    %47 = vector.load %arg13[%c0_34, %45, %46, %c0_35] : memref<1x2x16x128xf32, #tpu.memory_space<vmem>>, vector<1x1x2x128xf32>
    %48 = vector.shape_cast %47 : vector<1x1x2x128xf32> to vector<2x128xf32>
    %49 = vector.shape_cast %44 : vector<2x128xf32> to vector<1x1x2x128xf32>
    tpu.vector_store %arg13[%c0_34, %45, %46, %c0_35], %49 {strides = array<i32>} : memref<1x2x16x128xf32, #tpu.memory_space<vmem>>, vector<1x1x2x128xf32>,
    %c1_i32 = arith.constant 1 : i32
    %c2_i32_36 = arith.constant 2 : i32
    %50 = arith.muli %arg0, %c2_i32_36 : i32
    %51 = arith.addi %50, %c1_i32 : i32
    %52 = arith.index_cast %51 : i32 to index
    %53 = memref.load %arg2[%52] : memref<4xi32, #tpu.memory_space<smem>>
    %54 = arith.index_cast %c1_i32 : i32 to index
    %c0_37 = arith.constant 0 : index
    %55 = vector.load %arg14[%54, %c0_37] : memref<2x128xf32, #tpu.memory_space<vmem>>, vector<1x128xf32>
    %56 = vector.broadcast %55 : vector<1x128xf32> to vector<2x128xf32>
    %57 = arith.addf %36, %56 : vector<2x128xf32>
    %c0_38 = arith.constant 0 : index
    %58 = arith.index_cast %c1_i32 : i32 to index
    %59 = arith.index_cast %53 : i32 to index
    %c0_39 = arith.constant 0 : index
    %60 = vector.load %arg13[%c0_38, %58, %59, %c0_39] : memref<1x2x16x128xf32, #tpu.memory_space<vmem>>, vector<1x1x2x128xf32>
    %61 = vector.shape_cast %60 : vector<1x1x2x128xf32> to vector<2x128xf32>
    %62 = vector.shape_cast %57 : vector<2x128xf32> to vector<1x1x2x128xf32>
    tpu.vector_store %arg13[%c0_38, %58, %59, %c0_39], %62 {strides = array<i32>} : memref<1x2x16x128xf32, #tpu.memory_space<vmem>>, vector<1x1x2x128xf32>,
    %c2_i32_40 = arith.constant 2 : i32
    return
  }
  func.func @transform_0(%arg0: i32, %arg1: i32, %arg2: memref<4xi32, #tpu.memory_space<smem>>) -> (i32, i32) {
    %c0_i32 = arith.constant 0 : i32
    %c0_i32_0 = arith.constant 0 : i32
    %c0_i32_1 = arith.constant 0 : i32
    return %c0_i32, %c0_i32_0 : i32, i32
  }
  func.func @transform_1(%arg0: i32, %arg1: i32, %arg2: memref<4xi32, #tpu.memory_space<smem>>) -> (i32, i32) {
    %c0_i32 = arith.constant 0 : i32
    %c0_i32_0 = arith.constant 0 : i32
    %c0_i32_1 = arith.constant 0 : i32
    return %c0_i32, %c0_i32_0 : i32, i32
  }
  func.func @transform_2(%arg0: i32, %arg1: i32, %arg2: memref<4xi32, #tpu.memory_space<smem>>) -> (i32, i32) {
    %c0_i32 = arith.constant 0 : i32
    %c0_i32_0 = arith.constant 0 : i32
    %c0_i32_1 = arith.constant 0 : i32
    return %c0_i32, %c0_i32_0 : i32, i32
  }
  func.func @transform_3(%arg0: i32, %arg1: i32, %arg2: memref<4xi32, #tpu.memory_space<smem>>) -> (i32, i32) {
    %c0_i32 = arith.constant 0 : i32
    %c0_i32_0 = arith.constant 0 : i32
    %c0_i32_1 = arith.constant 0 : i32
    return %c0_i32, %c0_i32_0 : i32, i32
  }
  func.func @transform_4(%arg0: i32, %arg1: i32, %arg2: memref<4xi32, #tpu.memory_space<smem>>) -> (i32, i32) {
    %c0_i32 = arith.constant 0 : i32
    %c0_i32_0 = arith.constant 0 : i32
    %c0_i32_1 = arith.constant 0 : i32
    return %c0_i32, %c0_i32_0 : i32, i32
  }
  func.func @transform_5(%arg0: i32, %arg1: i32, %arg2: memref<4xi32, #tpu.memory_space<smem>>) -> (i32, i32) {
    %c0_i32 = arith.constant 0 : i32
    %c0_i32_0 = arith.constant 0 : i32
    %c0_i32_1 = arith.constant 0 : i32
    return %c0_i32, %c0_i32_0 : i32, i32
  }
  func.func @transform_6(%arg0: i32, %arg1: i32, %arg2: memref<4xi32, #tpu.memory_space<smem>>) -> (i32, i32) {
    %c0_i32 = arith.constant 0 : i32
    %c0_i32_0 = arith.constant 0 : i32
    %c0_i32_1 = arith.constant 0 : i32
    return %c0_i32, %c0_i32_0 : i32, i32
  }
  func.func @transform_7(%arg0: i32, %arg1: i32, %arg2: memref<4xi32, #tpu.memory_space<smem>>) -> (i32, i32, i32) {
    %c0_i32 = arith.constant 0 : i32
    %c0_i32_0 = arith.constant 0 : i32
    %c0_i32_1 = arith.constant 0 : i32
    return %arg0, %c0_i32, %c0_i32_0 : i32, i32, i32
  }
  func.func @transform_8(%arg0: i32, %arg1: i32, %arg2: memref<4xi32, #tpu.memory_space<smem>>) -> (i32, i32) {
    %c0_i32 = arith.constant 0 : i32
    %c0_i32_0 = arith.constant 0 : i32
    %c0_i32_1 = arith.constant 0 : i32
    return %c0_i32, %c0_i32_0 : i32, i32
  }
  func.func @transform_9(%arg0: i32, %arg1: i32, %arg2: memref<4xi32, #tpu.memory_space<smem>>) -> (i32, i32) {
    %c0_i32 = arith.constant 0 : i32
    %c0_i32_0 = arith.constant 0 : i32
    %c0_i32_1 = arith.constant 0 : i32
    return %c0_i32, %c0_i32_0 : i32, i32
  }
  func.func @transform_10(%arg0: i32, %arg1: i32, %arg2: memref<4xi32, #tpu.memory_space<smem>>) -> (i32, i32, i32, i32) {
    %c0_i32 = arith.constant 0 : i32
    %c0_i32_0 = arith.constant 0 : i32
    %c0_i32_1 = arith.constant 0 : i32
    return %arg1, %arg0, %c0_i32, %c0_i32_0 : i32, i32, i32, i32
  }
}

</mosaic_0001>

<llo_original>
// kernel: tpu_custom_call.1
$region0: #{tpu_custom_call.1}
  #allocation0 [shape = 'u32[]', space=smem, size = 0x4, offset = 0x4, fixed_abs, tag = 'smem constant byte address 0x4 - core index']
  #allocation1 [shape = 'u32[144,128]{1,0:T(1,128)}', space=vmem, size = 0x12000, scoped, tag = 'internal scratch']
  #allocation2 [shape = 'f32[2,128]{1,0:T(2,128)}', space=vmem, size = 0x400, scoped, tag = 'scratch operand']
  #allocation3 [shape = 's32[1]{0}', space=sflag, size = 0x4, scoped, tag = 'scoped memory for tpu_custom_call.1']
  #allocation4 [shape = 'u8[512]{0}', space=smem, size = 0x200, scoped, tag = 'prefetched SMEM operand 0']
  %s0 = inlined_call_operand.hbm [shape: s32[4], index: 0, kind: input, shape index: {}]
  %s1 = inlined_call_operand.vmem [shape: f32[2,64], index: 1, kind: input, shape index: {}]
  %s2 = inlined_call_operand.vmem [shape: f32[4,64], index: 2, kind: input, shape index: {}]
  %s3 = inlined_call_operand.hbm [shape: f32[64,128], index: 3, kind: input, shape index: {}]
  %s4 = inlined_call_operand.hbm [shape: f32[64,128], index: 4, kind: input, shape index: {}]
  %s5 = inlined_call_operand.vmem [shape: f32[1,128], index: 5, kind: input, shape index: {}]
  %s6 = inlined_call_operand.hbm [shape: f32[128,128], index: 6, kind: input, shape index: {}]
  %s7 = inlined_call_operand.vmem [shape: f32[1,128], index: 7, kind: input, shape index: {}]
  %s8 = inlined_call_operand.hbm [shape: f32[4,16,128], index: 8, kind: input, shape index: {}]
  %s9 = inlined_call_operand.vmem [shape: f32[2,128], index: 9, kind: input, shape index: {}]
  %s10 = inlined_call_operand.vmem [shape: f32[2,128], index: 10, kind: input, shape index: {}]
  %s11 = inlined_call_operand.hbm [shape: f32[2,4,16,128], index: 11, kind: output, shape index: {}]
  %s12 = sld [smem:[#allocation0]]
  $region89: #{tpu_custom_call.1} parent=0
    _
  %s14 = ssub.s32 1, %s12
  %s15 = scalar_select 0, %s14, %s12
  %17 = dma.hbm_to_smem %s0, 16, [#allocation4], [#allocation3]
  %18 = dma.done [#allocation3], 16
  %19 = sfence
  $region1: #{tpu_custom_call.1} parent=0
    #allocation5 [shape = 'u8[32768]{0}', space=vmem, size = 0x8000, scoped, tag = 'input window, operand 3, single buffered']
    #allocation6 [shape = 's32[2]{0}', space=sflag, size = 0x8, scoped, tag = 'scoped memory for tpu_custom_call.1']
    #allocation7 [shape = 's32[2]{0}', space=sflag, size = 0x8, scoped, tag = 'scoped memory for tpu_custom_call.1']
    #allocation8 [shape = 'u8[32768]{0}', space=vmem, size = 0x8000, scoped, tag = 'input window, operand 4, single buffered']
    #allocation9 [shape = 's32[1]{0}', space=sflag, size = 0x4, scoped, tag = 'scoped memory for tpu_custom_call.1']
    #allocation10 [shape = 'u8[65536]{0}', space=vmem, size = 0x10000, scoped, tag = 'input window, operand 6, single buffered']
    #allocation11 [shape = 'u8[32768]{0}', space=vmem, size = 0x8000, scoped, tag = 'input window, operand 8']
    #allocation12 [shape = 's32[2]{0}', space=sflag, size = 0x8, scoped, tag = 'scoped memory for tpu_custom_call.1']
    #allocation13 [shape = 'u8[32768]{0}', space=vmem, size = 0x8000, scoped, tag = 'output window, operand 0']
    %20 = vsyncpa [#allocation6], 0
    %21 = vsyncpa [#allocation9], 0
    %22 = vsyncpa [#allocation12], 0
    %s23 = scalar_lea.sflag [#allocation12], 1
    %24 = vsyncpa %s23, 0
    %25 = vsyncpa [#allocation7], 0
    %s26 = scalar_lea.sflag [#allocation7], 1
    %27 = vsyncpa %s26, 0
    loop: start=0, step=1, limit=6
    $region2: #{tpu_custom_call.1} parent=1 // loop_pre_header
      _
    $region3: #{tpu_custom_call.1} parent=1 // loop_header
      %s29 = sphi 0, %s33
      %p30 = scmp.ge.s32.totalorder %s29, 6
      %s36 = sphi 0, %s48
      %s37 = sphi 0, %s44
      %s38 = sphi 0, %s36
      %s39 = sphi 0, %s37
      %s40 = sphi 0, %s38
      %s41 = sphi 0, %s39
      %s49 = sphi 0, %s49
      %s51 = sphi 0, %s49
      %s52 = sphi 0, %s51
      %s66 = sphi 0, %s52
      %s70 = sphi 0, %s70
      %s72 = sphi 0, %s70
      %s73 = sphi 0, %s72
      %s87 = sphi 0, %s73
      %s91 = sphi 0, %s91
      %s93 = sphi 0, %s91
      %s94 = sphi 0, %s93
      %s108 = sphi 0, %s94
      %s112 = sphi 0, %s112
      %s114 = sphi 0, %s112
      %s115 = sphi 0, %s114
      %s129 = sphi 0, %s115
      %s133 = sphi 0, %s133
      %s135 = sphi 0, %s133
      %s136 = sphi 0, %s135
      %s150 = sphi 0, %s136
      %s154 = sphi 0, %s154
      %s156 = sphi 0, %s154
      %s157 = sphi 0, %s156
      %s171 = sphi 0, %s157
      %s175 = sphi 0, %s175
      %s177 = sphi 0, %s175
      %s178 = sphi 0, %s177
      %s192 = sphi 0, %s178
      %s198 = sphi 0, %s200
      %s201 = sphi 0, %s198
      %s202 = sphi 0, %s201
      %s218 = sphi 0, %s202
      %s222 = sphi 0, %s222
      %s224 = sphi 0, %s222
      %s225 = sphi 0, %s224
      %s239 = sphi 0, %s225
      %s243 = sphi 0, %s243
      %s245 = sphi 0, %s243
      %s246 = sphi 0, %s245
      %s260 = sphi 0, %s246
      %s268 = sphi 0, %s270
      %s271 = sphi 0, %s268
      %s272 = sphi 0, %s271
      %s288 = sphi 0, %s272
    $region4: #{tpu_custom_call.1} parent=1 // loop_header_branch
      %32 = sbr.rel (%p30) target = $region8
    $region5: #{tpu_custom_call.1} parent=1 // loop_body
      %s34 = ssub.s32 %s29, 1
      %s35 = ssub.s32 %s29, 2
      %s42 = sadd.s32 1, %s37
      %p43 = scmp.ge.s32.totalorder %s42, 2
      %s44 = scalar_select %p43, 0, %s42
      %s45 = sadd.s32 1, %s36
      %s46 = scalar_select %p43, %s45, %s36
      %p47 = scmp.ge.s32.totalorder %s46, 2
      %s48 = scalar_select %p47, 0, %s46
      %s50 = sadd.s32 %s49, 1
      %p53 = scmp.eq.s32.totalorder %s29, 3
      %p54 = scmp.ne.s32.totalorder %s49, %s51
      %p55 = scmp.eq.s32.totalorder %s29, 0
      %p56 = por %p54, %p55
      %p57 = scmp.ne.s32.totalorder %s49, %s51
      %p58 = scmp.eq.s32.totalorder %s34, 3
      %p59 = por %p57, %p58
      %p60 = scmp.ne.s32.totalorder %s51, %s52
      %p61 = scmp.eq.s32.totalorder %s34, 0
      %p62 = por %p60, %p61
      %p63 = scmp.ne.s32.totalorder %s51, %s52
      %p64 = scmp.eq.s32.totalorder %s35, 3
      %p65 = por %p63, %p64
      %p67 = scmp.ne.s32.totalorder %s52, %s66
      %p68 = scmp.eq.s32.totalorder %s35, 0
      %p69 = por %p67, %p68
      %s71 = sadd.s32 %s70, 1
      %p74 = scmp.eq.s32.totalorder %s29, 3
      %p75 = scmp.ne.s32.totalorder %s70, %s72
      %p76 = scmp.eq.s32.totalorder %s29, 0
      %p77 = por %p75, %p76
      %p78 = scmp.ne.s32.totalorder %s70, %s72
      %p79 = scmp.eq.s32.totalorder %s34, 3
      %p80 = por %p78, %p79
      %p81 = scmp.ne.s32.totalorder %s72, %s73
      %p82 = scmp.eq.s32.totalorder %s34, 0
      %p83 = por %p81, %p82
      %p84 = scmp.ne.s32.totalorder %s72, %s73
      %p85 = scmp.eq.s32.totalorder %s35, 3
      %p86 = por %p84, %p85
      %p88 = scmp.ne.s32.totalorder %s73, %s87
      %p89 = scmp.eq.s32.totalorder %s35, 0
      %p90 = por %p88, %p89
      %s92 = sadd.s32 %s91, 1
      %p95 = scmp.eq.s32.totalorder %s29, 3
      %p96 = scmp.ne.s32.totalorder %s91, %s93
      %p97 = scmp.eq.s32.totalorder %s29, 0
      %p98 = por %p96, %p97
      %p99 = scmp.ne.s32.totalorder %s91, %s93
      %p100 = scmp.eq.s32.totalorder %s34, 3
      %p101 = por %p99, %p100
      %p102 = scmp.ne.s32.totalorder %s93, %s94
      %p103 = scmp.eq.s32.totalorder %s34, 0
      %p104 = por %p102, %p103
      %p105 = scmp.ne.s32.totalorder %s93, %s94
      %p106 = scmp.eq.s32.totalorder %s35, 3
      %p107 = por %p105, %p106
      %p109 = scmp.ne.s32.totalorder %s94, %s108
      %p110 = scmp.eq.s32.totalorder %s35, 0
      %p111 = por %p109, %p110
      %s113 = sadd.s32 %s112, 1
      %p116 = scmp.eq.s32.totalorder %s29, 3
      %p117 = scmp.ne.s32.totalorder %s112, %s114
      %p118 = scmp.eq.s32.totalorder %s29, 0
      %p119 = por %p117, %p118
      %p120 = scmp.ne.s32.totalorder %s112, %s114
      %p121 = scmp.eq.s32.totalorder %s34, 3
      %p122 = por %p120, %p121
      %p123 = scmp.ne.s32.totalorder %s114, %s115
      %p124 = scmp.eq.s32.totalorder %s34, 0
      %p125 = por %p123, %p124
      %p126 = scmp.ne.s32.totalorder %s114, %s115
      %p127 = scmp.eq.s32.totalorder %s35, 3
      %p128 = por %p126, %p127
      %p130 = scmp.ne.s32.totalorder %s115, %s129
      %p131 = scmp.eq.s32.totalorder %s35, 0
      %p132 = por %p130, %p131
      %s134 = sadd.s32 %s133, 1
      %p137 = scmp.eq.s32.totalorder %s29, 3
      %p138 = scmp.ne.s32.totalorder %s133, %s135
      %p139 = scmp.eq.s32.totalorder %s29, 0
      %p140 = por %p138, %p139
      %p141 = scmp.ne.s32.totalorder %s133, %s135
      %p142 = scmp.eq.s32.totalorder %s34, 3
      %p143 = por %p141, %p142
      %p144 = scmp.ne.s32.totalorder %s135, %s136
      %p145 = scmp.eq.s32.totalorder %s34, 0
      %p146 = por %p144, %p145
      %p147 = scmp.ne.s32.totalorder %s135, %s136
      %p148 = scmp.eq.s32.totalorder %s35, 3
      %p149 = por %p147, %p148
      %p151 = scmp.ne.s32.totalorder %s136, %s150
      %p152 = scmp.eq.s32.totalorder %s35, 0
      %p153 = por %p151, %p152
      %s155 = sadd.s32 %s154, 1
      %p158 = scmp.eq.s32.totalorder %s29, 3
      %p159 = scmp.ne.s32.totalorder %s154, %s156
      %p160 = scmp.eq.s32.totalorder %s29, 0
      %p161 = por %p159, %p160
      %p162 = scmp.ne.s32.totalorder %s154, %s156
      %p163 = scmp.eq.s32.totalorder %s34, 3
      %p164 = por %p162, %p163
      %p165 = scmp.ne.s32.totalorder %s156, %s157
      %p166 = scmp.eq.s32.totalorder %s34, 0
      %p167 = por %p165, %p166
      %p168 = scmp.ne.s32.totalorder %s156, %s157
      %p169 = scmp.eq.s32.totalorder %s35, 3
      %p170 = por %p168, %p169
      %p172 = scmp.ne.s32.totalorder %s157, %s171
      %p173 = scmp.eq.s32.totalorder %s35, 0
      %p174 = por %p172, %p173
      %s176 = sadd.s32 %s175, 1
      %p179 = scmp.eq.s32.totalorder %s29, 3
      %p180 = scmp.ne.s32.totalorder %s175, %s177
      %p181 = scmp.eq.s32.totalorder %s29, 0
      %p182 = por %p180, %p181
      %p183 = scmp.ne.s32.totalorder %s175, %s177
      %p184 = scmp.eq.s32.totalorder %s34, 3
      %p185 = por %p183, %p184
      %p186 = scmp.ne.s32.totalorder %s177, %s178
      %p187 = scmp.eq.s32.totalorder %s34, 0
      %p188 = por %p186, %p187
      %p189 = scmp.ne.s32.totalorder %s177, %s178
      %p190 = scmp.eq.s32.totalorder %s35, 3
      %p191 = por %p189, %p190
      %p193 = scmp.ne.s32.totalorder %s178, %s192
      %p194 = scmp.eq.s32.totalorder %s35, 0
      %p195 = por %p193, %p194
      %s196 = ssub.s32 %s36, %s48
      %p197 = scmp.eq.s32.totalorder %s196, 0
      %s199 = sadd.s32 %s198, 1
      %s200 = scalar_select %p197, %s198, %s199
      %p203 = pneg %p197
      %p204 = scmp.eq.s32.totalorder %s29, 3
      %p205 = por %p203, %p204
      %p206 = scmp.ne.s32.totalorder %s198, %s201
      %p207 = scmp.eq.s32.totalorder %s29, 0
      %p208 = por %p206, %p207
      %p209 = scmp.ne.s32.totalorder %s198, %s201
      %p210 = scmp.eq.s32.totalorder %s34, 3
      %p211 = por %p209, %p210
      %p212 = scmp.ne.s32.totalorder %s201, %s202
      %p213 = scmp.eq.s32.totalorder %s34, 0
      %p214 = por %p212, %p213
      %p215 = scmp.ne.s32.totalorder %s201, %s202
      %p216 = scmp.eq.s32.totalorder %s35, 3
      %p217 = por %p215, %p216
      %p219 = scmp.ne.s32.totalorder %s202, %s218
      %p220 = scmp.eq.s32.totalorder %s35, 0
      %p221 = por %p219, %p220
      %s223 = sadd.s32 %s222, 1
      %p226 = scmp.eq.s32.totalorder %s29, 3
      %p227 = scmp.ne.s32.totalorder %s222, %s224
      %p228 = scmp.eq.s32.totalorder %s29, 0
      %p229 = por %p227, %p228
      %p230 = scmp.ne.s32.totalorder %s222, %s224
      %p231 = scmp.eq.s32.totalorder %s34, 3
      %p232 = por %p230, %p231
      %p233 = scmp.ne.s32.totalorder %s224, %s225
      %p234 = scmp.eq.s32.totalorder %s34, 0
      %p235 = por %p233, %p234
      %p236 = scmp.ne.s32.totalorder %s224, %s225
      %p237 = scmp.eq.s32.totalorder %s35, 3
      %p238 = por %p236, %p237
      %p240 = scmp.ne.s32.totalorder %s225, %s239
      %p241 = scmp.eq.s32.totalorder %s35, 0
      %p242 = por %p240, %p241
      %s244 = sadd.s32 %s243, 1
      %p247 = scmp.eq.s32.totalorder %s29, 3
      %p248 = scmp.ne.s32.totalorder %s243, %s245
      %p249 = scmp.eq.s32.totalorder %s29, 0
      %p250 = por %p248, %p249
      %p251 = scmp.ne.s32.totalorder %s243, %s245
      %p252 = scmp.eq.s32.totalorder %s34, 3
      %p253 = por %p251, %p252
      %p254 = scmp.ne.s32.totalorder %s245, %s246
      %p255 = scmp.eq.s32.totalorder %s34, 0
      %p256 = por %p254, %p255
      %p257 = scmp.ne.s32.totalorder %s245, %s246
      %p258 = scmp.eq.s32.totalorder %s35, 3
      %p259 = por %p257, %p258
      %p261 = scmp.ne.s32.totalorder %s246, %s260
      %p262 = scmp.eq.s32.totalorder %s35, 0
      %p263 = por %p261, %p262
      %s264 = ssub.s32 %s37, %s44
      %s265 = ssub.s32 %s36, %s48
      %s266 = sor.u32 %s264, %s265
      %p267 = scmp.eq.s32.totalorder %s266, 0
      %s269 = sadd.s32 %s268, 1
      %s270 = scalar_select %p267, %s268, %s269
      %p273 = pneg %p267
      %p274 = scmp.eq.s32.totalorder %s29, 3
      %p275 = por %p273, %p274
      %p276 = scmp.ne.s32.totalorder %s268, %s271
      %p277 = scmp.eq.s32.totalorder %s29, 0
      %p278 = por %p276, %p277
      %p279 = scmp.ne.s32.totalorder %s268, %s271
      %p280 = scmp.eq.s32.totalorder %s34, 3
      %p281 = por %p279, %p280
      %p282 = scmp.ne.s32.totalorder %s271, %s272
      %p283 = scmp.eq.s32.totalorder %s34, 0
      %p284 = por %p282, %p283
      %p285 = scmp.ne.s32.totalorder %s271, %s272
      %p286 = scmp.eq.s32.totalorder %s35, 3
      %p287 = por %p285, %p286
      %p289 = scmp.ne.s32.totalorder %s272, %s288
      %p290 = scmp.eq.s32.totalorder %s35, 0
      %p291 = por %p289, %p290
      %p292 = scmp.le.s32.totalorder 1, %s29
      %p293 = scmp.lt.s32.totalorder %s29, 5
      %p294 = pnand %p292, %p293
      %p295 = pneg %p294
      // Predicated region
      $region9: #{tpu_custom_call.1} parent=5 // pred_check
        _
      $region10: #{tpu_custom_call.1} parent=5 // pred_check_branch
        %297 = sbr.rel (%p294) target = $region12
      $region11: #{tpu_custom_call.1} parent=5 // pred_region
        %s298 = ssub.s32 %s29, 1
        // Predicated region
        $region13: #{tpu_custom_call.1} parent=11 // pred_check
          %p299 = pneg %p62
        $region14: #{tpu_custom_call.1} parent=11 // pred_check_branch
          %301 = sbr.rel (%p299) target = $region16
        $region15: #{tpu_custom_call.1} parent=11 // pred_region
          _
        $region16: #{tpu_custom_call.1} parent=11 // pred_fallthru
          _
        // Predicated region
        $region17: #{tpu_custom_call.1} parent=11 // pred_check
          %p302 = pneg %p83
        $region18: #{tpu_custom_call.1} parent=11 // pred_check_branch
          %304 = sbr.rel (%p302) target = $region20
        $region19: #{tpu_custom_call.1} parent=11 // pred_region
          _
        $region20: #{tpu_custom_call.1} parent=11 // pred_fallthru
          _
        // Predicated region
        $region21: #{tpu_custom_call.1} parent=11 // pred_check
          %p305 = pneg %p104
        $region22: #{tpu_custom_call.1} parent=11 // pred_check_branch
          %307 = sbr.rel (%p305) target = $region24
        $region23: #{tpu_custom_call.1} parent=11 // pred_region
          %s309 = ssub.s32 1024, 1024
          %310 = vsyncadd [#allocation6], %s309
          %s311 = sshll.u32 [#allocation5], 4
          %s312 = int_to_ptr.vmem [resolvable:$true] %s311
          %317 = dma.hbm_to_vmem [thread:$0]  %s3, 1024, %s312, [#allocation6], 128, 128, 8
        $region24: #{tpu_custom_call.1} parent=11 // pred_fallthru
          _
        // Predicated region
        $region25: #{tpu_custom_call.1} parent=11 // pred_check
          %p318 = pneg %p125
        $region26: #{tpu_custom_call.1} parent=11 // pred_check_branch
          %320 = sbr.rel (%p318) target = $region28
        $region27: #{tpu_custom_call.1} parent=11 // pred_region
          %s322 = ssub.s32 1024, 1024
          %323 = vsyncadd [#allocation9], %s322
          %s324 = sshll.u32 [#allocation8], 4
          %s325 = int_to_ptr.vmem [resolvable:$true] %s324
          %330 = dma.hbm_to_vmem [thread:$0]  %s4, 1024, %s325, [#allocation9], 128, 128, 8
        $region28: #{tpu_custom_call.1} parent=11 // pred_fallthru
          _
        // Predicated region
        $region29: #{tpu_custom_call.1} parent=11 // pred_check
          %p331 = pneg %p146
        $region30: #{tpu_custom_call.1} parent=11 // pred_check_branch
          %333 = sbr.rel (%p331) target = $region32
        $region31: #{tpu_custom_call.1} parent=11 // pred_region
          _
        $region32: #{tpu_custom_call.1} parent=11 // pred_fallthru
          _
        // Predicated region
        $region33: #{tpu_custom_call.1} parent=11 // pred_check
          %p334 = pneg %p167
        $region34: #{tpu_custom_call.1} parent=11 // pred_check_branch
          %336 = sbr.rel (%p334) target = $region36
        $region35: #{tpu_custom_call.1} parent=11 // pred_region
          %s338 = ssub.s32 2048, 2048
          %339 = vsyncadd [#allocation9], %s338
          %s340 = sshll.u32 [#allocation10], 4
          %s341 = int_to_ptr.vmem [resolvable:$true] %s340
          %346 = dma.hbm_to_vmem [thread:$0]  %s6, 2048, %s341, [#allocation9], 128, 128, 8
        $region36: #{tpu_custom_call.1} parent=11 // pred_fallthru
          _
        // Predicated region
        $region37: #{tpu_custom_call.1} parent=11 // pred_check
          %p347 = pneg %p188
        $region38: #{tpu_custom_call.1} parent=11 // pred_check_branch
          %349 = sbr.rel (%p347) target = $region40
        $region39: #{tpu_custom_call.1} parent=11 // pred_region
          _
        $region40: #{tpu_custom_call.1} parent=11 // pred_fallthru
          _
        // Predicated region
        $region41: #{tpu_custom_call.1} parent=11 // pred_check
          %p350 = pneg %p235
        $region42: #{tpu_custom_call.1} parent=11 // pred_check_branch
          %352 = sbr.rel (%p350) target = $region44
        $region43: #{tpu_custom_call.1} parent=11 // pred_region
          _
        $region44: #{tpu_custom_call.1} parent=11 // pred_fallthru
          _
        // Predicated region
        $region45: #{tpu_custom_call.1} parent=11 // pred_check
          %p353 = pneg %p256
        $region46: #{tpu_custom_call.1} parent=11 // pred_check_branch
          %355 = sbr.rel (%p353) target = $region48
        $region47: #{tpu_custom_call.1} parent=11 // pred_region
          _
        $region48: #{tpu_custom_call.1} parent=11 // pred_fallthru
          _
      $region12: #{tpu_custom_call.1} parent=5 // pred_fallthru
        _
      %p356 = scmp.lt.s32.totalorder %s29, 4
      // Predicated region
      $region49: #{tpu_custom_call.1} parent=5 // pred_check
        %p357 = pneg %p356
      $region50: #{tpu_custom_call.1} parent=5 // pred_check_branch
        %359 = sbr.rel (%p357) target = $region52
      $region51: #{tpu_custom_call.1} parent=5 // pred_region
        // Predicated region
        $region53: #{tpu_custom_call.1} parent=51 // pred_check
          %p360 = pneg %p208
        $region54: #{tpu_custom_call.1} parent=51 // pred_check_branch
          %362 = sbr.rel (%p360) target = $region56
        $region55: #{tpu_custom_call.1} parent=51 // pred_region
          %s363 = sand.u32 %s198, 1
          %s364 = scalar_lea.sflag [#allocation12], %s363
          %s365 = sand.u32 %s198, 1
          %s366 = smul.addr %s365, 32
          %s367 = scalar_lea.vmem [#allocation11], %s366
          %s368 = smul.u32 2, %s36
          %s370 = ssub.s32 512, 512
          %371 = vsyncadd %s364, %s370
          %s372 = smul.addr %s368, 2
          %s373 = smul.addr %s372, 128
          %s374 = scalar_lea.hbm %s8, %s373
          %s375 = sshll.u32 %s367, 4
          %s376 = int_to_ptr.vmem [resolvable:$true] %s375
          %381 = dma.hbm_to_vmem [thread:$0]  %s374, 512, %s376, %s364, 128, 128, 8
        $region56: #{tpu_custom_call.1} parent=51 // pred_fallthru
          _
      $region52: #{tpu_custom_call.1} parent=5 // pred_fallthru
        _
      %p382 = scmp.le.s32.totalorder 1, %s29
      %p383 = scmp.lt.s32.totalorder %s29, 5
      %p384 = pnand %p382, %p383
      %p385 = pneg %p384
      // Predicated region
      $region57: #{tpu_custom_call.1} parent=5 // pred_check
        _
      $region58: #{tpu_custom_call.1} parent=5 // pred_check_branch
        %387 = sbr.rel (%p384) target = $region60
      $region59: #{tpu_custom_call.1} parent=5 // pred_region
        %s388 = ssub.s32 %s29, 1
        // Predicated region
        $region61: #{tpu_custom_call.1} parent=59 // pred_check
          %p389 = pneg %p104
        $region62: #{tpu_custom_call.1} parent=59 // pred_check_branch
          %391 = sbr.rel (%p389) target = $region64
        $region63: #{tpu_custom_call.1} parent=59 // pred_region
          %392 = dma.done [#allocation6], 1024
        $region64: #{tpu_custom_call.1} parent=59 // pred_fallthru
          _
        // Predicated region
        $region65: #{tpu_custom_call.1} parent=59 // pred_check
          %p393 = pneg %p125
        $region66: #{tpu_custom_call.1} parent=59 // pred_check_branch
          %395 = sbr.rel (%p393) target = $region68
        $region67: #{tpu_custom_call.1} parent=59 // pred_region
          %396 = dma.done [#allocation9], 1024
        $region68: #{tpu_custom_call.1} parent=59 // pred_fallthru
          _
        // Predicated region
        $region69: #{tpu_custom_call.1} parent=59 // pred_check
          %p397 = pneg %p167
        $region70: #{tpu_custom_call.1} parent=59 // pred_check_branch
          %399 = sbr.rel (%p397) target = $region72
        $region71: #{tpu_custom_call.1} parent=59 // pred_region
          %400 = dma.done [#allocation9], 2048
        $region72: #{tpu_custom_call.1} parent=59 // pred_fallthru
          _
        %s401 = sand.u32 %s201, 1
        %s402 = scalar_lea.sflag [#allocation12], %s401
        %s403 = sand.u32 %s201, 1
        %s404 = smul.addr %s403, 32
        %s405 = scalar_lea.vmem [#allocation11], %s404
        // Predicated region
        $region73: #{tpu_custom_call.1} parent=59 // pred_check
          %p406 = pneg %p214
        $region74: #{tpu_custom_call.1} parent=59 // pred_check_branch
          %408 = sbr.rel (%p406) target = $region76
        $region75: #{tpu_custom_call.1} parent=59 // pred_region
          %409 = dma.done %s402, 512
        $region76: #{tpu_custom_call.1} parent=59 // pred_fallthru
          _
        %p410 = pneg %p62
        %p411 = pneg %p59
        %p412 = pneg %p83
        %p413 = pneg %p80
        %p414 = pneg %p104
        %p415 = pneg %p101
        %p416 = pneg %p125
        %p417 = pneg %p122
        %p418 = pneg %p146
        %p419 = pneg %p143
        %p420 = pneg %p167
        %p421 = pneg %p164
        %p422 = pneg %p188
        %p423 = pneg %p185
        %s424 = sand.u32 %s201, 1
        %s425 = scalar_lea.sflag [#allocation12], %s424
        %s426 = sand.u32 %s201, 1
        %s427 = smul.addr %s426, 32
        %s428 = scalar_lea.vmem [#allocation11], %s427
        %p429 = pneg %p214
        %p430 = pneg %p211
        %p431 = pneg %p235
        %p432 = pneg %p232
        %p433 = pneg %p256
        %p434 = pneg %p253
        %p435 = pneg %p284
        %p436 = pneg %p281
        %s437 = sand.u32 %s271, 1
        %s438 = scalar_lea.sflag [#allocation7], %s437
        %s439 = sand.u32 %s271, 1
        %s440 = smul.addr %s439, 32
        %s441 = scalar_lea.vmem [#allocation13], %s440
        %s442 = smul.u32 2, %s38
        %s443 = smul.u32 2, %s38
        %s444 = scalar_lea.vmem %s1, %s39
        %v445 = vld [vmem:[%s444] sm:$0x1]
        %s446 = smul.u32 %s38, 2
        %s447 = scalar_lea.vmem %s2, %s446
        %v448 = vld [vmem:[%s447] sm:$0x3]
        %v449 = vld [vmem:[#allocation5] sm:$0xff]
        %v450 = vld [vmem:[#allocation5 + $0x8] sm:$0xff]
        %v451 = vld [vmem:[#allocation5 + $0x10] sm:$0xff]
        %v452 = vld [vmem:[#allocation5 + $0x18] sm:$0xff]
        %v453 = vld [vmem:[#allocation5 + $0x20] sm:$0xff]
        %v454 = vld [vmem:[#allocation5 + $0x28] sm:$0xff]
        %v455 = vld [vmem:[#allocation5 + $0x30] sm:$0xff]
        %v456 = vld [vmem:[#allocation5 + $0x38] sm:$0xff]
        %vm457 = vcmask 523264
        %v459 = vsel %vm457, %v445, 0
        %461 = vmatprep.subr.mxu0 0.0
        %462 = vmatpush1.msra.mxu0 %v449
        %463 = vmatprep.subr.mxu0 0.0
        %464 = vmatpush1.msra.mxu0 %v450
        %465 = vmatprep.subr.mxu0 0.0
        %466 = vmatpush1.msra.mxu0 %v451
        %467 = vmatprep.subr.mxu0 0.0
        %468 = vmatpush1.msra.mxu0 %v452
        %469 = vmatprep.subr.mxu0 0.0
        %470 = vmatpush1.msra.mxu0 %v453
        %471 = vmatprep.subr.mxu0 0.0
        %472 = vmatpush1.msra.mxu0 %v454
        %473 = vmatprep.subr.mxu0 0.0
        %474 = vmatpush1.msra.mxu0 %v455
        %475 = vmatprep.subr.mxu0 0.0
        %476 = vmatpush1.msra.mxu0 %v456
        %477 = vmatprep.subr.mxu0 0.0
        %478 = vmatpush1.msra.mxu0 0.0
        %479 = vmatprep.subr.mxu0 0.0
        %480 = vmatpush1.msra.mxu0 0.0
        %481 = vmatprep.subr.mxu0 0.0
        %482 = vmatpush1.msra.mxu0 0.0
        %483 = vmatprep.subr.mxu0 0.0
        %484 = vmatpush1.msra.mxu0 0.0
        %485 = vmatprep.subr.mxu0 0.0
        %486 = vmatpush1.msra.mxu0 0.0
        %487 = vmatprep.subr.mxu0 0.0
        %488 = vmatpush1.msra.mxu0 0.0
        %489 = vmatprep.subr.mxu0 0.0
        %490 = vmatpush1.msra.mxu0 0.0
        %491 = vmatprep.subr.mxu0 0.0
        %492 = vmatpush1.msra.mxu0 0.0
        %493 = vmatprep.subr.mxu0 0.0
        %494 = vmatpush1.msra.mxu0 0.0
        %495 = vmatprep.subr.mxu0 0.0
        %496 = vmatpush1.msra.mxu0 0.0
        %497 = vmatprep.subr.mxu0 0.0
        %498 = vmatpush1.msra.mxu0 0.0
        %499 = vmatprep.subr.mxu0 0.0
        %500 = vmatpush1.msra.mxu0 0.0
        %501 = vmatprep.subr.mxu0 0.0
        %502 = vmatpush1.msra.mxu0 0.0
        %503 = vmatprep.subr.mxu0 0.0
        %504 = vmatpush1.msra.mxu0 0.0
        %505 = vmatprep.subr.mxu0 0.0
        %506 = vmatpush1.msra.mxu0 0.0
        %507 = vmatprep.subr.mxu0 0.0
        %508 = vmatpush1.msra.mxu0 0.0
        %509 = vmatprep.subr.mxu0 0.0
        %510 = vmatpush1.msra.mxu0 0.0
        %511 = vmatprep.subr.mxu0 0.0
        %512 = vmatpush1.msra.mxu0 0.0
        %513 = vmatprep.subr.mxu0 0.0
        %514 = vmatpush1.msra.mxu0 0.0
        %515 = vmatprep.subr.mxu0 0.0
        %516 = vmatpush1.msra.mxu0 0.0
        %517 = vmatprep.subr.mxu0 0.0
        %518 = vmatpush1.msra.mxu0 0.0
        %519 = vmatprep.subr.mxu0 0.0
        %520 = vmatpush1.msra.mxu0 0.0
        %521 = vmatprep.subr.mxu0 0.0
        %522 = vmatpush1.msra.mxu0 0.0
        %523 = vmatprep.subr.mxu0 0.0
        %524 = vmatpush1.msra.mxu0 0.0
        %525 = vmatprep.mubr.f32.mxu0 0.0
        %526 = vmatmul.mubr.f32.gmra.mrb[0].mxu0 %v459
        %v527 = vpop.f32.mrb[0].mxu0
        %v528 = vadd.f32 0.0, %v527
        %v529 = vpop.f32.mrb[0].mxu0
        %530 = vdwg.mxu0
        %v531 = vld [vmem:[#allocation8] sm:$0xff]
        %v532 = vld [vmem:[#allocation8 + $0x8] sm:$0xff]
        %v533 = vld [vmem:[#allocation8 + $0x10] sm:$0xff]
        %v534 = vld [vmem:[#allocation8 + $0x18] sm:$0xff]
        %v535 = vld [vmem:[#allocation8 + $0x20] sm:$0xff]
        %v536 = vld [vmem:[#allocation8 + $0x28] sm:$0xff]
        %v537 = vld [vmem:[#allocation8 + $0x30] sm:$0xff]
        %v538 = vld [vmem:[#allocation8 + $0x38] sm:$0xff]
        %v540 = vsel %vm457, %v448, 0
        %542 = vmatprep.subr.mxu0 0.0
        %543 = vmatpush1.msra.mxu0 %v531
        %544 = vmatprep.subr.mxu0 0.0
        %545 = vmatpush1.msra.mxu0 %v532
        %546 = vmatprep.subr.mxu0 0.0
        %547 = vmatpush1.msra.mxu0 %v533
        %548 = vmatprep.subr.mxu0 0.0
        %549 = vmatpush1.msra.mxu0 %v534
        %550 = vmatprep.subr.mxu0 0.0
        %551 = vmatpush1.msra.mxu0 %v535
        %552 = vmatprep.subr.mxu0 0.0
        %553 = vmatpush1.msra.mxu0 %v536
        %554 = vmatprep.subr.mxu0 0.0
        %555 = vmatpush1.msra.mxu0 %v537
        %556 = vmatprep.subr.mxu0 0.0
        %557 = vmatpush1.msra.mxu0 %v538
        %558 = vmatprep.subr.mxu0 0.0
        %559 = vmatpush1.msra.mxu0 0.0
        %560 = vmatprep.subr.mxu0 0.0
        %561 = vmatpush1.msra.mxu0 0.0
        %562 = vmatprep.subr.mxu0 0.0
        %563 = vmatpush1.msra.mxu0 0.0
        %564 = vmatprep.subr.mxu0 0.0
        %565 = vmatpush1.msra.mxu0 0.0
        %566 = vmatprep.subr.mxu0 0.0
        %567 = vmatpush1.msra.mxu0 0.0
        %568 = vmatprep.subr.mxu0 0.0
        %569 = vmatpush1.msra.mxu0 0.0
        %570 = vmatprep.subr.mxu0 0.0
        %571 = vmatpush1.msra.mxu0 0.0
        %572 = vmatprep.subr.mxu0 0.0
        %573 = vmatpush1.msra.mxu0 0.0
        %574 = vmatprep.subr.mxu0 0.0
        %575 = vmatpush1.msra.mxu0 0.0
        %576 = vmatprep.subr.mxu0 0.0
        %577 = vmatpush1.msra.mxu0 0.0
        %578 = vmatprep.subr.mxu0 0.0
        %579 = vmatpush1.msra.mxu0 0.0
        %580 = vmatprep.subr.mxu0 0.0
        %581 = vmatpush1.msra.mxu0 0.0
        %582 = vmatprep.subr.mxu0 0.0
        %583 = vmatpush1.msra.mxu0 0.0
        %584 = vmatprep.subr.mxu0 0.0
        %585 = vmatpush1.msra.mxu0 0.0
        %586 = vmatprep.subr.mxu0 0.0
        %587 = vmatpush1.msra.mxu0 0.0
        %588 = vmatprep.subr.mxu0 0.0
        %589 = vmatpush1.msra.mxu0 0.0
        %590 = vmatprep.subr.mxu0 0.0
        %591 = vmatpush1.msra.mxu0 0.0
        %592 = vmatprep.subr.mxu0 0.0
        %593 = vmatpush1.msra.mxu0 0.0
        %594 = vmatprep.subr.mxu0 0.0
        %595 = vmatpush1.msra.mxu0 0.0
        %596 = vmatprep.subr.mxu0 0.0
        %597 = vmatpush1.msra.mxu0 0.0
        %598 = vmatprep.subr.mxu0 0.0
        %599 = vmatpush1.msra.mxu0 0.0
        %600 = vmatprep.subr.mxu0 0.0
        %601 = vmatpush1.msra.mxu0 0.0
        %602 = vmatprep.subr.mxu0 0.0
        %603 = vmatpush1.msra.mxu0 0.0
        %604 = vmatprep.subr.mxu0 0.0
        %605 = vmatpush1.msra.mxu0 0.0
        %606 = vmatprep.mubr.f32.mxu0 0.0
        %607 = vmatmul.mubr.f32.gmra.mrb[0].mxu0 %v540
        %v608 = vpop.f32.mrb[0].mxu0
        %v609 = vadd.f32 0.0, %v608
        %v610 = vpop.f32.mrb[0].mxu0
        %611 = vdwg.mxu0
        %v612 = vlaneseq
        %v613 = vshrl.u32 %v612, 7
        %v614 = vsub.s32 0, %v613
        %v615 = vrot.slane %v528, %v614
        %v616 = vadd.f32 %v615, %v609
        %v617 = vld [vmem:[%s5] sm:$0x1]
        %v619 = vlaneseq
        %v620 = vshrl.u32 %v619, 7
        %v621 = vsub.s32 0, %v620
        %v622 = vrot.slane %v617, %v621
        %v624 = vadd.f32 %v616, %v622
        %v625 = vmax.f32 %v624, 0.0
        %v626 = vld [vmem:[#allocation10] sm:$0xff]
        %v627 = vld [vmem:[#allocation10 + $0x8] sm:$0xff]
        %v628 = vld [vmem:[#allocation10 + $0x10] sm:$0xff]
        %v629 = vld [vmem:[#allocation10 + $0x18] sm:$0xff]
        %v630 = vld [vmem:[#allocation10 + $0x20] sm:$0xff]
        %v631 = vld [vmem:[#allocation10 + $0x28] sm:$0xff]
        %v632 = vld [vmem:[#allocation10 + $0x30] sm:$0xff]
        %v633 = vld [vmem:[#allocation10 + $0x38] sm:$0xff]
        %v634 = vld [vmem:[#allocation10 + $0x40] sm:$0xff]
        %v635 = vld [vmem:[#allocation10 + $0x48] sm:$0xff]
        %v636 = vld [vmem:[#allocation10 + $0x50] sm:$0xff]
        %v637 = vld [vmem:[#allocation10 + $0x58] sm:$0xff]
        %v638 = vld [vmem:[#allocation10 + $0x60] sm:$0xff]
        %v639 = vld [vmem:[#allocation10 + $0x68] sm:$0xff]
        %v640 = vld [vmem:[#allocation10 + $0x70] sm:$0xff]
        %v641 = vld [vmem:[#allocation10 + $0x78] sm:$0xff]
        %v642 = vld [vmem:[%s7] sm:$0x1]
        %v644 = vlaneseq
        %v645 = vshrl.u32 %v644, 7
        %v646 = vsub.s32 0, %v645
        %v647 = vrot.slane %v642, %v646
        %649 = vmatprep.subr.mxu0 0.0
        %650 = vmatpush1.msra.mxu0 %v626
        %651 = vmatprep.subr.mxu0 0.0
        %652 = vmatpush1.msra.mxu0 %v627
        %653 = vmatprep.subr.mxu0 0.0
        %654 = vmatpush1.msra.mxu0 %v628
        %655 = vmatprep.subr.mxu0 0.0
        %656 = vmatpush1.msra.mxu0 %v629
        %657 = vmatprep.subr.mxu0 0.0
        %658 = vmatpush1.msra.mxu0 %v630
        %659 = vmatprep.subr.mxu0 0.0
        %660 = vmatpush1.msra.mxu0 %v631
        %661 = vmatprep.subr.mxu0 0.0
        %662 = vmatpush1.msra.mxu0 %v632
        %663 = vmatprep.subr.mxu0 0.0
        %664 = vmatpush1.msra.mxu0 %v633
        %665 = vmatprep.subr.mxu0 0.0
        %666 = vmatpush1.msra.mxu0 %v634
        %667 = vmatprep.subr.mxu0 0.0
        %668 = vmatpush1.msra.mxu0 %v635
        %669 = vmatprep.subr.mxu0 0.0
        %670 = vmatpush1.msra.mxu0 %v636
        %671 = vmatprep.subr.mxu0 0.0
        %672 = vmatpush1.msra.mxu0 %v637
        %673 = vmatprep.subr.mxu0 0.0
        %674 = vmatpush1.msra.mxu0 %v638
        %675 = vmatprep.subr.mxu0 0.0
        %676 = vmatpush1.msra.mxu0 %v639
        %677 = vmatprep.subr.mxu0 0.0
        %678 = vmatpush1.msra.mxu0 %v640
        %679 = vmatprep.subr.mxu0 0.0
        %680 = vmatpush1.msra.mxu0 %v641
        %681 = vmatprep.subr.mxu0 0.0
        %682 = vmatpush1.msra.mxu0 0.0
        %683 = vmatprep.subr.mxu0 0.0
        %684 = vmatpush1.msra.mxu0 0.0
        %685 = vmatprep.subr.mxu0 0.0
        %686 = vmatpush1.msra.mxu0 0.0
        %687 = vmatprep.subr.mxu0 0.0
        %688 = vmatpush1.msra.mxu0 0.0
        %689 = vmatprep.subr.mxu0 0.0
        %690 = vmatpush1.msra.mxu0 0.0
        %691 = vmatprep.subr.mxu0 0.0
        %692 = vmatpush1.msra.mxu0 0.0
        %693 = vmatprep.subr.mxu0 0.0
        %694 = vmatpush1.msra.mxu0 0.0
        %695 = vmatprep.subr.mxu0 0.0
        %696 = vmatpush1.msra.mxu0 0.0
        %697 = vmatprep.subr.mxu0 0.0
        %698 = vmatpush1.msra.mxu0 0.0
        %699 = vmatprep.subr.mxu0 0.0
        %700 = vmatpush1.msra.mxu0 0.0
        %701 = vmatprep.subr.mxu0 0.0
        %702 = vmatpush1.msra.mxu0 0.0
        %703 = vmatprep.subr.mxu0 0.0
        %704 = vmatpush1.msra.mxu0 0.0
        %705 = vmatprep.subr.mxu0 0.0
        %706 = vmatpush1.msra.mxu0 0.0
        %707 = vmatprep.subr.mxu0 0.0
        %708 = vmatpush1.msra.mxu0 0.0
        %709 = vmatprep.subr.mxu0 0.0
        %710 = vmatpush1.msra.mxu0 0.0
        %711 = vmatprep.subr.mxu0 0.0
        %712 = vmatpush1.msra.mxu0 0.0
        %713 = vmatprep.mubr.f32.mxu0 0.0
        %714 = vmatmul.mubr.f32.gmra.mrb[0].mxu0 %v625
        %v715 = vpop.f32.mrb[0].mxu0
        %v716 = vadd.f32 %v647, %v715
        %v717 = vpop.f32.mrb[0].mxu0
        %718 = vdwg.mxu0
        %719 = vst [vmem:[#allocation2] sm:$0x3] %v716
        %v720 = vld [vmem:[%s405] sm:$0xff]
        %v721 = vld [vmem:[%s405 + $0x8] sm:$0xff]
        %v722 = vld [vmem:[%s405 + $0x10] sm:$0xff]
        %v723 = vld [vmem:[%s405 + $0x18] sm:$0xff]
        %724 = vst [vmem:[%s441] sm:$0xff] %v720
        %725 = vst [vmem:[%s441 + $0x8] sm:$0xff] %v721
        %726 = vst [vmem:[%s441 + $0x10] sm:$0xff] %v722
        %727 = vst [vmem:[%s441 + $0x18] sm:$0xff] %v723
        %v728 = vld [vmem:[#allocation2] sm:$0x3]
        %v729 = vld [vmem:[%s9] sm:$0x3]
        %v732 = vunpack.c.l.s4 1966171168
        %v733 = vunpack.c.0.s8 %v732
        %v734 = vlaneseq
        %v735 = vshrl.u32 %v734, 7
        %v736 = vsub.s32 %v733, %v735
        %v737 = vrot.slane %v728, %v736
        %v738 = vcombine.high %v737, %v737
        %v740 = vunpack.c.l.s4 1966171168
        %v741 = vunpack.c.0.s8 %v740
        %v742 = vlaneseq
        %v743 = vshrl.u32 %v742, 7
        %v744 = vsub.s32 %v741, %v743
        %v745 = vrot.slane %v737, %v744
        %v747 = vunpack.c.l.s4 1966171168
        %v748 = vunpack.c.0.s8 %v747
        %v749 = vlaneseq
        %v750 = vshrl.u32 %v749, 7
        %v751 = vsub.s32 %v748, %v750
        %v752 = vrot.slane %v738, %v751
        %v753 = vlaneseq
        %v754 = vshrl.u32 %v753, 7
        %v755 = vsub.s32 0, %v754
        %v756 = vrot.slane %v745, %v755
        %v757 = vlaneseq
        %v758 = vshrl.u32 %v757, 7
        %v759 = vsub.s32 0, %v758
        %v760 = vrot.slane %v752, %v759
        %v763 = vadd.f32 %v729, %v756
        %v764 = vadd.f32 %v729, %v760
        %765 = vst [vmem:[%s441 + $0x1] sm:$0x3] %v763
        %766 = vst [vmem:[%s441 + $0x11] sm:$0x3] %v764
        %v767 = vld [vmem:[%s10] sm:$0x3]
        %s768 = sld [smem:[#allocation4 + %s446]]
        %v769 = vld [vmem:[#allocation2] sm:$0x1]
        %v770 = vlaneseq
        %v771 = vshrl.u32 %v770, 7
        %v772 = vsub.s32 0, %v771
        %v773 = vrot.slane %v769, %v772
        %v774 = vadd.f32 %v767, %v773
        %s775 = scalar_lea.vmem %s441, %s768 [#allocation13]
        %776 = vst [vmem:[%s775] sm:$0x3] %v774
        %s777 = sadd.s32 %s446, 1
        %s778 = sld [smem:[#allocation4 + %s777]]
        %v779 = vld [vmem:[#allocation2 + $0x1] sm:$0x1]
        %v780 = vlaneseq
        %v781 = vshrl.u32 %v780, 7
        %v782 = vsub.s32 0, %v781
        %v783 = vrot.slane %v779, %v782
        %v784 = vadd.f32 %v767, %v783
        %s785 = sadd.s32 %s778, 16
        %s786 = scalar_lea.vmem %s441, %s785 [#allocation13]
        %787 = vst [vmem:[%s786] sm:$0x3] %v784
        %s788 = sand.u32 %s271, 1
        %s789 = scalar_lea.sflag [#allocation7], %s788
        %s790 = sand.u32 %s271, 1
        %s791 = smul.addr %s790, 32
        %s792 = scalar_lea.vmem [#allocation13], %s791
        // Predicated region
        $region77: #{tpu_custom_call.1} parent=59 // pred_check
          %p793 = pneg %p281
        $region78: #{tpu_custom_call.1} parent=59 // pred_check_branch
          %795 = sbr.rel (%p793) target = $region80
        $region79: #{tpu_custom_call.1} parent=59 // pred_region
          %s796 = smul.u32 2, %s38
          %s798 = ssub.s32 512, 512
          %799 = vsyncadd %s789, %s798
          %s800 = smul.addr %s796, 2
          %s801 = smul.addr %s39, 8
          %s802 = sadd.s32 %s800, %s801
          %s803 = smul.addr %s802, 128
          %s804 = scalar_lea.hbm %s11, %s803
          %s805 = sshll.u32 %s792, 4
          %s806 = int_to_ptr.vmem [resolvable:$true] %s805
          %811 = dma.vmem_to_hbm [thread:$0]  %s806, 512, %s804, %s789, 128, 128, 8
        $region80: #{tpu_custom_call.1} parent=59 // pred_fallthru
          _
      $region60: #{tpu_custom_call.1} parent=5 // pred_fallthru
        _
      %p812 = scmp.le.s32.totalorder 2, %s29
      // Predicated region
      $region81: #{tpu_custom_call.1} parent=5 // pred_check
        %p813 = pneg %p812
      $region82: #{tpu_custom_call.1} parent=5 // pred_check_branch
        %815 = sbr.rel (%p813) target = $region84
      $region83: #{tpu_custom_call.1} parent=5 // pred_region
        %s816 = ssub.s32 %s29, 2
        // Predicated region
        $region85: #{tpu_custom_call.1} parent=83 // pred_check
          %p817 = pneg %p287
        $region86: #{tpu_custom_call.1} parent=83 // pred_check_branch
          %819 = sbr.rel (%p817) target = $region88
        $region87: #{tpu_custom_call.1} parent=83 // pred_region
          %s820 = sand.u32 %s272, 1
          %s821 = scalar_lea.sflag [#allocation7], %s820
          %s822 = sand.u32 %s272, 1
          %s823 = smul.addr %s822, 32
          %s824 = scalar_lea.vmem [#allocation13], %s823
          %825 = dma.done %s821, 512
        $region88: #{tpu_custom_call.1} parent=83 // pred_fallthru
          _
      $region84: #{tpu_custom_call.1} parent=5 // pred_fallthru
        _
    $region6: #{tpu_custom_call.1} parent=1 // loop_footer
      %s33 = sadd.s32 1, %s29
    $region7: #{tpu_custom_call.1} parent=1 // loop_footer_branch
      %28 = sbr.rel target = $region3
    $region8: #{tpu_custom_call.1} parent=1 // loop_exit
      _
    %826 = vsyncpa [#allocation6], 1
    %s827 = scalar_lea.sflag [#allocation6], 1
    %828 = vsyncpa %s827, 1
    %829 = vsyncpa [#allocation9], 1
    %830 = vsyncpa [#allocation12], 1
    %s831 = scalar_lea.sflag [#allocation12], 1
    %832 = vsyncpa %s831, 1
    %833 = vsyncpa [#allocation7], 1
    %s834 = scalar_lea.sflag [#allocation7], 1
    %835 = vsyncpa %s834, 1

</llo_original>
